<compile_context>
chip_gen: v7x
topology: tpu7x:2x2x1
jax: 0.10.0
libtpu: 0.0.40
codegen_flags: <defaults>
</compile_context>

<pallas_src>
import jax
import jax.numpy as jnp
from jax.experimental import pallas as pl
from jax.experimental.pallas import tpu as pltpu

_MIB = 1024 * 1024


def _round_up(x, m):
    return (x + m - 1) // m * m


def _pad2(x, rows, cols):
    r, c = x.shape
    if r == rows and c == cols:
        return x
    return jnp.pad(x, ((0, rows - r), (0, cols - c)))


def _vmem_capacity_bytes():
    """Physical VMEM per TensorCore (128 MiB on v5e/v6e, 64 MiB on v7x)."""
    try:
        return int(pltpu.get_tpu_info().vmem_capacity_bytes)
    except Exception:
        return 64 * _MIB  # conservative (v7x per-core) fallback


# ----------------------------- Pallas kernel ------------------------------- #
def gemm_bias_kernel(x_ref, w_ref, b_ref, o_ref):
    """y = x @ W + b — f32 MXU inputs with f32 accumulation (module is .float())."""
    o_ref[...] = (
        jnp.dot(x_ref[...], w_ref[...], preferred_element_type=jnp.float32)
        + b_ref[...]
    ).astype(o_ref.dtype)


def linear_pallas(x, w, b, *, tm_max=512, tn_max=512):
    """x: [B, C] f32, w: [C, D] f32, b: [1, D] f32  ->  [B, D] f32.

    Tiling:
      * batch tiled by `tm` (grid axis 0, parallel),
      * output features tiled by `tn` (grid axis 1, parallel) so a large D
        tiles gracefully and small-batch calls still give both v7x TCs work,
      * contraction dim C kept at its true size (padded to 8-sublane quantum
        only, never to 128).
    """
    B, C = x.shape
    D = w.shape[1]

    # --- tile-size selection (256-aligned for the v6e/v7x 256x256 MXU) ------ #
    Cp = _round_up(C, 8)                     # sublane quantum only, NOT 128
    if D > 128:
        tn = min(tn_max, _round_up(D, 256))  # 256-aligned N tiles
    else:
        tn = 128                             # minimum lane-dense width
    if B >= tm_max:
        tm = tm_max                          # tm_max is a multiple of 256
    else:
        tm = _round_up(B, 8)                 # f32 tiles: 8-row sublane quantum

    # --- per-generation VMEM budget ----------------------------------------- #
    capacity = _vmem_capacity_bytes()
    budget = max(capacity - 16 * _MIB, 32 * _MIB)  # leave Mosaic scratch headroom

    def step_bytes(tm_, tn_):
        # double-buffered x / w / b / out tiles, all f32
        return 4 * 2 * (tm_ * Cp + Cp * tn_ + 8 * tn_ + tm_ * tn_)

    # Shrink tiles (not just the limit) if the working set would not fit.
    while step_bytes(tm, tn) > budget and tm > 8:
        tm = max(8, tm // 2)
    while step_bytes(tm, tn) > budget and tn > 128:
        tn = max(128, tn // 2)

    Bp = _round_up(B, tm)
    Dp = _round_up(D, tn)

    x_p = _pad2(x, Bp, Cp)   # f32, true channel width (8-padded)
    w_p = _pad2(w, Cp, Dp)   # f32, batch-invariant (VMEM-resident)
    b_p = _pad2(b, 1, Dp)    # f32

    grid = (Bp // tm, Dp // tn)

    cost = pl.CostEstimate(
        flops=2 * Bp * Cp * Dp,
        transcendentals=0,
        bytes_accessed=(Bp * Cp + Cp * Dp + Dp + Bp * Dp) * 4,
    )

    vmem_limit = int(min(max(2 * step_bytes(tm, tn), 32 * _MIB), budget))

    out_p = pl.pallas_call(
        gemm_bias_kernel,
        out_shape=jax.ShapeDtypeStruct((Bp, Dp), jnp.float32),
        grid=grid,
        in_specs=[
            pl.BlockSpec((tm, Cp), lambda i, j: (i, 0)),   # x: streamed over batch
            pl.BlockSpec((Cp, tn), lambda i, j: (0, j)),   # W_eff: batch-invariant
            pl.BlockSpec((1, tn), lambda i, j: (0, j)),    # b_eff: batch-invariant
        ],
        out_specs=pl.BlockSpec((tm, tn), lambda i, j: (i, j)),
        compiler_params=pltpu.CompilerParams(
            dimension_semantics=("parallel", "parallel"),  # megacore-shardable
            vmem_limit_bytes=vmem_limit,
        ),
        cost_estimate=cost,
    )(x_p, w_p, b_p)

    return out_p[:B, :D]


# --------------------------- Module-level wrapper --------------------------- #
class ImageEncodingClipPallas:
    """JAX/Pallas port of image_encoding_clip (deterministic params)."""

    def __init__(self, in_channels, img_encoder_input_dim, visual_feat_dim, key):
        k_embed_w, k_embed_b, k_proj_w, k_proj_b = jax.random.split(key, 4)

        # TODO(synk): stand-in CLIP encoder params (global avg-pool + linear
        # embed to img_encoder_input_dim) replacing clip.encode_image.
        self.embed_w = (
            jax.random.normal(k_embed_w, (in_channels, img_encoder_input_dim),
                              jnp.float32) * 0.02
        )
        self.embed_b = (
            jax.random.normal(k_embed_b, (1, img_encoder_input_dim),
                              jnp.float32) * 0.02
        )

        # nn.Linear(img_encoder_input_dim, visual_feat_dim)
        bound = 1.0 / (img_encoder_input_dim ** 0.5)
        self.proj_w = jax.random.uniform(
            k_proj_w, (img_encoder_input_dim, visual_feat_dim), jnp.float32,
            minval=-bound, maxval=bound)
        self.proj_b = jax.random.uniform(
            k_proj_b, (1, visual_feat_dim), jnp.float32,
            minval=-bound, maxval=bound)

        # Both linears are frozen forward-pass parameters, so precompose once:
        #   (x @ W1 + b1) @ W2 + b2  ==  x @ (W1 @ W2) + (b1 @ W2 + b2)
        # The kernel then runs ONE f32 GEMM with the tiny pooled-channel
        # contraction (no [B, D1] intermediate, half the MXU work).
        self.w_eff = self.embed_w @ self.proj_w                  # [C, D2] f32
        self.b_eff = self.embed_b @ self.proj_w + self.proj_b    # [1, D2] f32

        # Pool + pad + kernel all inside one jit so XLA fuses the prologue.
        self._forward = jax.jit(self._forward_impl)

    def _forward_impl(self, images):
        # TODO(synk): stand-in for clip.encode_image (global avg-pool + embed).
        pooled = jnp.mean(images.astype(jnp.float32), axis=(2, 3))  # [B, C]
        return linear_pallas(pooled, self.w_eff, self.b_eff)

    def __call__(self, images):
        return self._forward(images)


# ---------------------------------- main ------------------------------------ #
if __name__ == "__main__":
    key = jax.random.PRNGKey(0)
    k_params, k_img = jax.random.split(key)

    B, C, H, W = 2, 4, 16, 16          # images: NCHW
    IMG_ENCODER_INPUT_DIM = 32         # opt.img_encoder_input_dim
    VISUAL_FEAT_DIM = 16               # opt.visual_feat_dim

    model = ImageEncodingClipPallas(C, IMG_ENCODER_INPUT_DIM, VISUAL_FEAT_DIM,
                                    k_params)

    images = jax.random.normal(k_img, (B, C, H, W), jnp.float32)

    out = jax.block_until_ready(model(images))
    assert out.shape == (B, VISUAL_FEAT_DIM) and out.dtype == jnp.float32

    # Reference: uncomposed f32 math of the original two-stage module
    # (pool -> stand-in embed -> nn.Linear proj).  All-f32 kernel math means
    # the tolerance can be tight.
    pooled = jnp.mean(images, axis=(2, 3))
    ref = (pooled @ model.embed_w + model.embed_b) @ model.proj_w + model.proj_b
    assert jnp.allclose(out, ref, atol=1e-4, rtol=1e-4)

    print("KERNEL_OK")
</pallas_src>

<mosaic_0001>
module attributes {stable_mosaic.version = 11 : i64} {
  func.func @gemm_bias_kernel(%arg0: i32, %arg1: i32, %arg2: memref<8x8xf32, #tpu.memory_space<vmem>>, %arg3: memref<8x128xf32, #tpu.memory_space<vmem>>, %arg4: memref<1x128xf32, #tpu.memory_space<vmem>>, %arg5: memref<8x128xf32, #tpu.memory_space<vmem>>) attributes {dimension_semantics = [#tpu.dimension_semantics<parallel>, #tpu.dimension_semantics<parallel>], iteration_bounds = array<i64: 1, 1>, scalar_prefetch = 0 : i64, scratch_operands = 0 : i64, tpu.core_type = #tpu.core_type<tc>, window_params = [{transform_indices = @transform_0, window_bounds = array<i64: 8, 8>}, {transform_indices = @transform_1, window_bounds = array<i64: 8, 128>}, {transform_indices = @transform_2, window_bounds = array<i64: 1, 128>}, {transform_indices = @transform_3, window_bounds = array<i64: 8, 128>}]} {
    %c0 = arith.constant 0 : index
    %c0_0 = arith.constant 0 : index
    %0 = vector.load %arg2[%c0, %c0_0] : memref<8x8xf32, #tpu.memory_space<vmem>>, vector<8x8xf32>
    %c0_1 = arith.constant 0 : index
    %c0_2 = arith.constant 0 : index
    %1 = vector.load %arg3[%c0_1, %c0_2] : memref<8x128xf32, #tpu.memory_space<vmem>>, vector<8x128xf32>
    %cst = arith.constant dense<0.000000e+00> : vector<8x128xf32>
    %2 = tpu.matmul %0, %1, %cst {dimension_numbers = #tpu.dot_dimension_numbers<[1], [0], [0], [1], [0, 0, 1, 1], [], []>} : vector<8x8xf32>, vector<8x128xf32>, vector<8x128xf32> -> vector<8x128xf32>
    %c0_3 = arith.constant 0 : index
    %c0_4 = arith.constant 0 : index
    %3 = vector.load %arg4[%c0_3, %c0_4] : memref<1x128xf32, #tpu.memory_space<vmem>>, vector<1x128xf32>
    %4 = vector.broadcast %3 : vector<1x128xf32> to vector<8x128xf32>
    %5 = arith.addf %2, %4 : vector<8x128xf32>
    %c0_5 = arith.constant 0 : index
    %c0_6 = arith.constant 0 : index
    %6 = vector.load %arg5[%c0_5, %c0_6] : memref<8x128xf32, #tpu.memory_space<vmem>>, vector<8x128xf32>
    tpu.vector_store %arg5[%c0_5, %c0_6], %5 {strides = array<i32>} : memref<8x128xf32, #tpu.memory_space<vmem>>, vector<8x128xf32>,
    return
  }
  func.func @transform_0(%arg0: i32, %arg1: i32) -> (i32, i32) {
    %c0_i32 = arith.constant 0 : i32
    %c0_i32_0 = arith.constant 0 : i32
    return %arg0, %c0_i32 : i32, i32
  }
  func.func @transform_1(%arg0: i32, %arg1: i32) -> (i32, i32) {
    %c0_i32 = arith.constant 0 : i32
    %c0_i32_0 = arith.constant 0 : i32
    return %c0_i32, %arg1 : i32, i32
  }
  func.func @transform_2(%arg0: i32, %arg1: i32) -> (i32, i32) {
    %c0_i32 = arith.constant 0 : i32
    %c0_i32_0 = arith.constant 0 : i32
    return %c0_i32, %arg1 : i32, i32
  }
  func.func @transform_3(%arg0: i32, %arg1: i32) -> (i32, i32) {
    %c0_i32 = arith.constant 0 : i32
    return %arg0, %arg1 : i32, i32
  }
}

</mosaic_0001>

<llo_original>
// kernel: _forward_impl.1
$region0: #{_forward_impl.1}
  #allocation0 [shape = 'u32[]', space=smem, size = 0x4, offset = 0x4, fixed_abs, tag = 'smem constant byte address 0x4 - core index']
  #allocation1 [shape = 'u32[144,128]{1,0:T(1,128)}', space=vmem, size = 0x12000, scoped, tag = 'internal scratch']
  %s0 = inlined_call_operand.vmem [shape: f32[8,8], index: 0, kind: input, shape index: {}]
  %s1 = inlined_call_operand.vmem [shape: f32[8,128], index: 1, kind: input, shape index: {}]
  %s2 = inlined_call_operand.vmem [shape: f32[1,128], index: 2, kind: input, shape index: {}]
  %s3 = inlined_call_operand.vmem [shape: f32[8,128], index: 3, kind: output, shape index: {}]
  %s4 = sld [smem:[#allocation0]]
  $region22: #{_forward_impl.1} parent=0
    _
  %s6 = ssub.s32 1, %s4
  %s7 = scalar_select 0, %s6, %s4
  // Predicated region
  $region2: #{_forward_impl.1} parent=0 // pred_check
    _
  $region3: #{_forward_impl.1} parent=0 // pred_check_branch
    %9 = sbr.rel (0) target = $region5
  $region4: #{_forward_impl.1} parent=0 // pred_region
    _
  $region5: #{_forward_impl.1} parent=0 // pred_fallthru
    _
  // Predicated region
  $region6: #{_forward_impl.1} parent=0 // pred_check
    _
  $region7: #{_forward_impl.1} parent=0 // pred_check_branch
    %11 = sbr.rel (0) target = $region9
  $region8: #{_forward_impl.1} parent=0 // pred_region
    _
  $region9: #{_forward_impl.1} parent=0 // pred_fallthru
    _
  // Predicated region
  $region10: #{_forward_impl.1} parent=0 // pred_check
    _
  $region11: #{_forward_impl.1} parent=0 // pred_check_branch
    %13 = sbr.rel (0) target = $region13
  $region12: #{_forward_impl.1} parent=0 // pred_region
    _
  $region13: #{_forward_impl.1} parent=0 // pred_fallthru
    _
  %v14 = vld [vmem:[%s0] sm:$0xff]
  %v15 = vld [vmem:[%s1] sm:$0xff]
  %v16 = vld [vmem:[%s2] sm:$0x1]
  %v18 = vlaneseq
  %v19 = vshrl.u32 %v18, 7
  %v20 = vsub.s32 0, %v19
  %v21 = vrot.slane %v16, %v20
  %vm23 = vcmask 64512
  %v25 = vsel %vm23, %v14, 0
  %27 = vmatprep.subr.mxu0 0.0
  %28 = vmatpush1.msra.mxu0 %v15
  %29 = vmatprep.subr.mxu0 0.0
  %30 = vmatpush1.msra.mxu0 0.0
  %31 = vmatprep.subr.mxu0 0.0
  %32 = vmatpush1.msra.mxu0 0.0
  %33 = vmatprep.subr.mxu0 0.0
  %34 = vmatpush1.msra.mxu0 0.0
  %35 = vmatprep.subr.mxu0 0.0
  %36 = vmatpush1.msra.mxu0 0.0
  %37 = vmatprep.subr.mxu0 0.0
  %38 = vmatpush1.msra.mxu0 0.0
  %39 = vmatprep.subr.mxu0 0.0
  %40 = vmatpush1.msra.mxu0 0.0
  %41 = vmatprep.subr.mxu0 0.0
  %42 = vmatpush1.msra.mxu0 0.0
  %43 = vmatprep.subr.mxu0 0.0
  %44 = vmatpush1.msra.mxu0 0.0
  %45 = vmatprep.subr.mxu0 0.0
  %46 = vmatpush1.msra.mxu0 0.0
  %47 = vmatprep.subr.mxu0 0.0
  %48 = vmatpush1.msra.mxu0 0.0
  %49 = vmatprep.subr.mxu0 0.0
  %50 = vmatpush1.msra.mxu0 0.0
  %51 = vmatprep.subr.mxu0 0.0
  %52 = vmatpush1.msra.mxu0 0.0
  %53 = vmatprep.subr.mxu0 0.0
  %54 = vmatpush1.msra.mxu0 0.0
  %55 = vmatprep.subr.mxu0 0.0
  %56 = vmatpush1.msra.mxu0 0.0
  %57 = vmatprep.subr.mxu0 0.0
  %58 = vmatpush1.msra.mxu0 0.0
  %59 = vmatprep.subr.mxu0 0.0
  %60 = vmatpush1.msra.mxu0 0.0
  %61 = vmatprep.subr.mxu0 0.0
  %62 = vmatpush1.msra.mxu0 0.0
  %63 = vmatprep.subr.mxu0 0.0
  %64 = vmatpush1.msra.mxu0 0.0
  %65 = vmatprep.subr.mxu0 0.0
  %66 = vmatpush1.msra.mxu0 0.0
  %67 = vmatprep.subr.mxu0 0.0
  %68 = vmatpush1.msra.mxu0 0.0
  %69 = vmatprep.subr.mxu0 0.0
  %70 = vmatpush1.msra.mxu0 0.0
  %71 = vmatprep.subr.mxu0 0.0
  %72 = vmatpush1.msra.mxu0 0.0
  %73 = vmatprep.subr.mxu0 0.0
  %74 = vmatpush1.msra.mxu0 0.0
  %75 = vmatprep.subr.mxu0 0.0
  %76 = vmatpush1.msra.mxu0 0.0
  %77 = vmatprep.subr.mxu0 0.0
  %78 = vmatpush1.msra.mxu0 0.0
  %79 = vmatprep.subr.mxu0 0.0
  %80 = vmatpush1.msra.mxu0 0.0
  %81 = vmatprep.subr.mxu0 0.0
  %82 = vmatpush1.msra.mxu0 0.0
  %83 = vmatprep.subr.mxu0 0.0
  %84 = vmatpush1.msra.mxu0 0.0
  %85 = vmatprep.subr.mxu0 0.0
  %86 = vmatpush1.msra.mxu0 0.0
  %87 = vmatprep.subr.mxu0 0.0
  %88 = vmatpush1.msra.mxu0 0.0
  %89 = vmatprep.subr.mxu0 0.0
  %90 = vmatpush1.msra.mxu0 0.0
  %91 = vmatprep.mubr.f32.mxu0 0.0
  %92 = vmatmul.mubr.f32.gmra.mrb[0].mxu0 %v25
  %v93 = vpop.f32.mrb[0].mxu0
  %v94 = vadd.f32 %v21, %v93
  %v95 = vpop.f32.mrb[0].mxu0
  %96 = vdwg.mxu0
  %97 = vst [vmem:[%s3] sm:$0xff] %v94
  // Predicated region
  $region14: #{_forward_impl.1} parent=0 // pred_check
    _
  $region15: #{_forward_impl.1} parent=0 // pred_check_branch
    %99 = sbr.rel (0) target = $region17
  $region16: #{_forward_impl.1} parent=0 // pred_region
    _
  $region17: #{_forward_impl.1} parent=0 // pred_fallthru
    _
  // Predicated region
  $region18: #{_forward_impl.1} parent=0 // pred_check
    _
  $region19: #{_forward_impl.1} parent=0 // pred_check_branch
    %101 = sbr.rel (0) target = $region21
  $region20: #{_forward_impl.1} parent=0 // pred_region
    _
  $region21: #{_forward_impl.1} parent=0 // pred_fallthru
    _

</llo_original>
